<compile_context>
chip_gen: v7x
topology: tpu7x:2x2x1
jax: 0.10.0
libtpu: 0.0.40
codegen_flags: <defaults>
</compile_context>

<pallas_src>
import functools

import jax
import jax.numpy as jnp
from jax.experimental import pallas as pl
from jax.experimental.pallas import tpu as pltpu


def _round_up(a, b):
    return (a + b - 1) // b * b


def _trivial_base_kernel(batch_ref, x_ref, wt_ref, scale_ref, biasg_ref,
                         out_ref, acc_ref):
    k = pl.program_id(0)

    @pl.when(k == 0)
    def _():
        acc_ref[...] = jnp.zeros_like(acc_ref)

    # Linear on this node tile: [TN, F] @ [F, O_pad] -> f32 (MXU accumulation).
    y = jnp.dot(x_ref[...], wt_ref[...], preferred_element_type=jnp.float32)
    y = y.astype(x_ref.dtype)  # bf16 operands for the pooling matmul when requested

    # In-kernel segment (one-hot) matrix for this node tile: [G_pad, TN].
    ids = batch_ref[...]                                   # [1, TN] int32 (pad = -1)
    g_pad = acc_ref.shape[0]
    tn = ids.shape[1]
    g_iota = jax.lax.broadcasted_iota(jnp.int32, (g_pad, tn), 0)
    seg = (g_iota == ids).astype(x_ref.dtype)              # [G_pad, TN]

    # Accumulate raw per-graph sums: [G_pad, TN] @ [TN, O_pad] -> [G_pad, O_pad].
    acc_ref[...] += jnp.dot(seg, y, preferred_element_type=jnp.float32)

    @pl.when(k == pl.num_programs(0) - 1)
    def _():
        # Mean = sum * (1/count); bias added post-pool, pre-masked so that
        # empty graphs stay exactly zero (same semantics as the dense-A version).
        out_ref[...] = acc_ref[...] * scale_ref[...] + biasg_ref[...]


@functools.partial(jax.jit, static_argnames=("num_graphs", "node_tile", "compute_dtype"))
def trivial_base_forward(x, batch, weight, bias, num_graphs, *,
                         node_tile=128, compute_dtype=jnp.float32):
    """x: [N, F] f32, batch: [N] int32 graph ids, weight: [O, F], bias: [O]."""
    assert node_tile % 128 == 0, "node_tile must be a multiple of 128 (lane width)"
    n_nodes, num_features = x.shape
    num_output = weight.shape[0]

    o_pad = _round_up(num_output, 128)          # lane-dense output / intermediate
    g_pad = _round_up(max(num_graphs, 1), 8)    # sublane-aligned graph axis
    n_pad = _round_up(max(n_nodes, 1), node_tile)

    # --- wrapper glue (cheap, O(N) / O(G)) -----------------------------------
    counts = jnp.zeros((num_graphs,), jnp.float32).at[batch].add(1.0)
    inv_counts = jnp.where(counts > 0, 1.0 / jnp.maximum(counts, 1.0), 0.0)
    scale = jnp.zeros((g_pad, 1), jnp.float32).at[:num_graphs, 0].set(inv_counts)

    bias_row = jnp.zeros((o_pad,), jnp.float32).at[:num_output].set(
        bias.astype(jnp.float32))
    nonempty = (counts > 0).astype(jnp.float32)
    biasg = jnp.zeros((g_pad, o_pad), jnp.float32).at[:num_graphs].set(
        nonempty[:, None] * bias_row[None, :])

    wt = jnp.zeros((num_features, o_pad), compute_dtype).at[:, :num_output].set(
        weight.T.astype(compute_dtype))
    x_p = jnp.zeros((n_pad, num_features), compute_dtype).at[:n_nodes].set(
        x.astype(compute_dtype))
    batch_p = jnp.full((1, n_pad), -1, jnp.int32).at[0, :n_nodes].set(
        batch.astype(jnp.int32))

    grid = (n_pad // node_tile,)
    itemsize = jnp.dtype(compute_dtype).itemsize

    cost = pl.CostEstimate(
        flops=int(2 * n_pad * num_features * o_pad + 2 * g_pad * n_pad * o_pad),
        transcendentals=0,
        bytes_accessed=int(
            n_pad * num_features * itemsize          # x
            + n_pad * 4                              # batch ids
            + num_features * o_pad * itemsize        # W^T
            + 2 * g_pad * o_pad * 4 + g_pad * 4      # bias, out, scale
        ),
    )

    out_p = pl.pallas_call(
        _trivial_base_kernel,
        out_shape=jax.ShapeDtypeStruct((g_pad, o_pad), jnp.float32),
        grid=grid,
        in_specs=[
            pl.BlockSpec((1, node_tile), lambda k: (0, k)),           # batch ids
            pl.BlockSpec((node_tile, num_features), lambda k: (k, 0)),  # x tile
            pl.BlockSpec((num_features, o_pad), lambda k: (0, 0)),    # W^T (resident)
            pl.BlockSpec((g_pad, 1), lambda k: (0, 0)),               # 1/count
            pl.BlockSpec((g_pad, o_pad), lambda k: (0, 0)),           # masked bias
        ],
        out_specs=pl.BlockSpec((g_pad, o_pad), lambda k: (0, 0)),
        scratch_shapes=[pltpu.VMEM((g_pad, o_pad), jnp.float32)],
        compiler_params=pltpu.CompilerParams(
            dimension_semantics=("arbitrary",),      # node axis is a reduction
            vmem_limit_bytes=32 * 1024 * 1024,       # safe on v5e/v6e/v7x for these tiles
        ),
        cost_estimate=cost,
    )(batch_p, x_p, wt, scale, biasg)

    return out_p[:num_graphs, :num_output]


if __name__ == "__main__":
    # Small synthetic graph batch: 8 nodes, 32 features, 16 outputs, 2 graphs.
    N_NODES, NUM_FEATURES, NUM_OUTPUT, NUM_GRAPHS = 8, 32, 16, 2

    key = jax.random.PRNGKey(0)
    kx, kw, kb = jax.random.split(key, 3)

    x = jax.random.normal(kx, (N_NODES, NUM_FEATURES), dtype=jnp.float32)
    batch = jnp.array([0, 0, 0, 0, 1, 1, 1, 1], dtype=jnp.int32)

    # Deterministic PyTorch-like Linear init: U(-1/sqrt(F), 1/sqrt(F)).
    bound = 1.0 / (NUM_FEATURES ** 0.5)
    weight = jax.random.uniform(kw, (NUM_OUTPUT, NUM_FEATURES),
                                minval=-bound, maxval=bound, dtype=jnp.float32)
    bias = jax.random.uniform(kb, (NUM_OUTPUT,),
                              minval=-bound, maxval=bound, dtype=jnp.float32)

    # Pure-JAX reference.
    y_ref = x @ weight.T + bias
    ref = jnp.stack([y_ref[batch == g].mean(axis=0) for g in range(NUM_GRAPHS)])

    # f32 path (v5e-friendly, tight tolerance).
    out = trivial_base_forward(x, batch, weight, bias, NUM_GRAPHS)
    out = jax.block_until_ready(out)
    assert out.shape == (NUM_GRAPHS, NUM_OUTPUT)
    assert jnp.allclose(out, ref, atol=1e-5, rtol=1e-5)

    # bf16-operand path (v6e/v7x MXU-friendly); accumulation stays f32.
    out_bf16 = trivial_base_forward(x, batch, weight, bias, NUM_GRAPHS,
                                    compute_dtype=jnp.bfloat16)
    out_bf16 = jax.block_until_ready(out_bf16)
    assert jnp.allclose(out_bf16, ref, atol=3e-2, rtol=3e-2)

    print("KERNEL_OK")
</pallas_src>

<mosaic_0001>
module attributes {stable_mosaic.version = 11 : i64} {
  func.func @_trivial_base_kernel(%arg0: i32, %arg1: memref<1x128xi32, #tpu.memory_space<vmem>>, %arg2: memref<128x32xf32, #tpu.memory_space<vmem>>, %arg3: memref<32x128xf32, #tpu.memory_space<vmem>>, %arg4: memref<8x1xf32, #tpu.memory_space<vmem>>, %arg5: memref<8x128xf32, #tpu.memory_space<vmem>>, %arg6: memref<8x128xf32, #tpu.memory_space<vmem>>, %arg7: memref<8x128xf32, #tpu.memory_space<vmem>>) attributes {dimension_semantics = [#tpu.dimension_semantics<arbitrary>], iteration_bounds = array<i64: 1>, scalar_prefetch = 0 : i64, scratch_operands = 1 : i64, tpu.core_type = #tpu.core_type<tc>, window_params = [{transform_indices = @transform_0, window_bounds = array<i64: 1, 128>}, {transform_indices = @transform_1, window_bounds = array<i64: 128, 32>}, {pipeline_mode = #tpu.pipeline_mode<synchronous>, transform_indices = @transform_2, window_bounds = array<i64: 32, 128>}, {pipeline_mode = #tpu.pipeline_mode<synchronous>, transform_indices = @transform_3, window_bounds = array<i64: 8, 1>}, {pipeline_mode = #tpu.pipeline_mode<synchronous>, transform_indices = @transform_4, window_bounds = array<i64: 8, 128>}, {pipeline_mode = #tpu.pipeline_mode<synchronous>, transform_indices = @transform_5, window_bounds = array<i64: 8, 128>}]} {
    %c0_i32 = arith.constant 0 : i32
    %0 = arith.cmpi eq, %arg0, %c0_i32 : i32
    %1 = arith.extui %0 : i1 to i32
    %c0_i32_0 = arith.constant 0 : i32
    %2 = arith.cmpi ne, %1, %c0_i32_0 : i32
    scf.if %2 {
      %cst_13 = arith.constant 0.000000e+00 : f32
      %19 = vector.broadcast %cst_13 : f32 to vector<8x128xf32>
      %c0_14 = arith.constant 0 : index
      %c0_15 = arith.constant 0 : index
      %20 = vector.load %arg7[%c0_14, %c0_15] : memref<8x128xf32, #tpu.memory_space<vmem>>, vector<8x128xf32>
      tpu.vector_store %arg7[%c0_14, %c0_15], %19 {strides = array<i32>} : memref<8x128xf32, #tpu.memory_space<vmem>>, vector<8x128xf32>,
    } else {
    }
    %c0 = arith.constant 0 : index
    %c0_1 = arith.constant 0 : index
    %3 = vector.load %arg2[%c0, %c0_1] : memref<128x32xf32, #tpu.memory_space<vmem>>, vector<128x32xf32>
    %c0_2 = arith.constant 0 : index
    %c0_3 = arith.constant 0 : index
    %4 = vector.load %arg3[%c0_2, %c0_3] : memref<32x128xf32, #tpu.memory_space<vmem>>, vector<32x128xf32>
    %cst = arith.constant dense<0.000000e+00> : vector<128x128xf32>
    %5 = tpu.matmul %3, %4, %cst {dimension_numbers = #tpu.dot_dimension_numbers<[1], [0], [0], [1], [0, 0, 1, 1], [], []>} : vector<128x32xf32>, vector<32x128xf32>, vector<128x128xf32> -> vector<128x128xf32>
    %c0_4 = arith.constant 0 : index
    %c0_5 = arith.constant 0 : index
    %6 = vector.load %arg1[%c0_4, %c0_5] : memref<1x128xi32, #tpu.memory_space<vmem>>, vector<1x128xi32>
    %7 = tpu.iota {dimensions = array<i32: 0>} : vector<8x128xi32>
    %8 = vector.broadcast %6 : vector<1x128xi32> to vector<8x128xi32>
    %9 = arith.cmpi eq, %7, %8 : vector<8x128xi32>
    %10 = arith.extui %9 : vector<8x128xi1> to vector<8x128xi32>
    %11 = arith.sitofp %10 : vector<8x128xi32> to vector<8x128xf32>
    %c0_6 = arith.constant 0 : index
    %c0_7 = arith.constant 0 : index
    %12 = vector.load %arg7[%c0_6, %c0_7] : memref<8x128xf32, #tpu.memory_space<vmem>>, vector<8x128xf32>
    %cst_8 = arith.constant dense<0.000000e+00> : vector<8x128xf32>
    %13 = tpu.matmul %11, %5, %cst_8 {dimension_numbers = #tpu.dot_dimension_numbers<[1], [0], [0], [1], [0, 0, 1, 1], [], []>} : vector<8x128xf32>, vector<128x128xf32>, vector<8x128xf32> -> vector<8x128xf32>
    %14 = arith.addf %12, %13 : vector<8x128xf32>
    %c0_9 = arith.constant 0 : index
    %c0_10 = arith.constant 0 : index
    %15 = vector.load %arg7[%c0_9, %c0_10] : memref<8x128xf32, #tpu.memory_space<vmem>>, vector<8x128xf32>
    tpu.vector_store %arg7[%c0_9, %c0_10], %14 {strides = array<i32>} : memref<8x128xf32, #tpu.memory_space<vmem>>, vector<8x128xf32>,
    %c0_i32_11 = arith.constant 0 : i32
    %16 = arith.cmpi eq, %arg0, %c0_i32_11 : i32
    %17 = arith.extui %16 : i1 to i32
    %c0_i32_12 = arith.constant 0 : i32
    %18 = arith.cmpi ne, %17, %c0_i32_12 : i32
    scf.if %18 {
      %c0_13 = arith.constant 0 : index
      %c0_14 = arith.constant 0 : index
      %19 = vector.load %arg7[%c0_13, %c0_14] : memref<8x128xf32, #tpu.memory_space<vmem>>, vector<8x128xf32>
      %c0_15 = arith.constant 0 : index
      %c0_16 = arith.constant 0 : index
      %20 = vector.load %arg4[%c0_15, %c0_16] : memref<8x1xf32, #tpu.memory_space<vmem>>, vector<8x1xf32>
      %21 = vector.broadcast %20 : vector<8x1xf32> to vector<8x128xf32>
      %22 = arith.mulf %19, %21 : vector<8x128xf32>
      %c0_17 = arith.constant 0 : index
      %c0_18 = arith.constant 0 : index
      %23 = vector.load %arg5[%c0_17, %c0_18] : memref<8x128xf32, #tpu.memory_space<vmem>>, vector<8x128xf32>
      %24 = arith.addf %22, %23 : vector<8x128xf32>
      %c0_19 = arith.constant 0 : index
      %c0_20 = arith.constant 0 : index
      %25 = vector.load %arg6[%c0_19, %c0_20] : memref<8x128xf32, #tpu.memory_space<vmem>>, vector<8x128xf32>
      tpu.vector_store %arg6[%c0_19, %c0_20], %24 {strides = array<i32>} : memref<8x128xf32, #tpu.memory_space<vmem>>, vector<8x128xf32>,
    } else {
    }
    return
  }
  func.func @transform_0(%arg0: i32) -> (i32, i32) {
    %c0_i32 = arith.constant 0 : i32
    %c0_i32_0 = arith.constant 0 : i32
    return %c0_i32, %arg0 : i32, i32
  }
  func.func @transform_1(%arg0: i32) -> (i32, i32) {
    %c0_i32 = arith.constant 0 : i32
    %c0_i32_0 = arith.constant 0 : i32
    return %arg0, %c0_i32 : i32, i32
  }
  func.func @transform_2(%arg0: i32) -> (i32, i32) {
    %c0_i32 = arith.constant 0 : i32
    %c0_i32_0 = arith.constant 0 : i32
    %c0_i32_1 = arith.constant 0 : i32
    return %c0_i32, %c0_i32_0 : i32, i32
  }
  func.func @transform_3(%arg0: i32) -> (i32, i32) {
    %c0_i32 = arith.constant 0 : i32
    %c0_i32_0 = arith.constant 0 : i32
    %c0_i32_1 = arith.constant 0 : i32
    return %c0_i32, %c0_i32_0 : i32, i32
  }
  func.func @transform_4(%arg0: i32) -> (i32, i32) {
    %c0_i32 = arith.constant 0 : i32
    %c0_i32_0 = arith.constant 0 : i32
    %c0_i32_1 = arith.constant 0 : i32
    return %c0_i32, %c0_i32_0 : i32, i32
  }
  func.func @transform_5(%arg0: i32) -> (i32, i32) {
    %c0_i32 = arith.constant 0 : i32
    %c0_i32_0 = arith.constant 0 : i32
    %c0_i32_1 = arith.constant 0 : i32
    return %c0_i32, %c0_i32_0 : i32, i32
  }
}

</mosaic_0001>

<llo_original>
// kernel: trivial_base_forward.1
$region0: #{trivial_base_forward.1}
  #allocation0 [shape = 'u32[]', space=smem, size = 0x4, offset = 0x4, fixed_abs, tag = 'smem constant byte address 0x4 - core index']
  #allocation1 [shape = 'u32[144,128]{1,0:T(1,128)}', space=vmem, size = 0x12000, scoped, tag = 'internal scratch']
  #allocation2 [shape = 'f32[8,128]{1,0:T(8,128)}', space=vmem, size = 0x1000, scoped, tag = 'scratch operand']
  %s0 = inlined_call_operand.vmem [shape: s32[1,128], index: 0, kind: input, shape index: {}]
  %s1 = inlined_call_operand.vmem [shape: f32[128,32], index: 1, kind: input, shape index: {}]
  %s2 = inlined_call_operand.vmem [shape: f32[32,128], index: 2, kind: input, shape index: {}]
  %s3 = inlined_call_operand.vmem [shape: f32[8,1], index: 3, kind: input, shape index: {}]
  %s4 = inlined_call_operand.vmem [shape: f32[8,128], index: 4, kind: input, shape index: {}]
  %s5 = inlined_call_operand.vmem [shape: f32[8,128], index: 5, kind: output, shape index: {}]
  %s6 = sld [smem:[#allocation0]]
  $region38: #{trivial_base_forward.1} parent=0
    _
  %s8 = ssub.s32 1, %s6
  %s9 = scalar_select 0, %s8, %s6
  // Predicated region
  $region2: #{trivial_base_forward.1} parent=0 // pred_check
    _
  $region3: #{trivial_base_forward.1} parent=0 // pred_check_branch
    %11 = sbr.rel (0) target = $region5
  $region4: #{trivial_base_forward.1} parent=0 // pred_region
    _
  $region5: #{trivial_base_forward.1} parent=0 // pred_fallthru
    _
  // Predicated region
  $region6: #{trivial_base_forward.1} parent=0 // pred_check
    _
  $region7: #{trivial_base_forward.1} parent=0 // pred_check_branch
    %13 = sbr.rel (0) target = $region9
  $region8: #{trivial_base_forward.1} parent=0 // pred_region
    _
  $region9: #{trivial_base_forward.1} parent=0 // pred_fallthru
    _
  // Predicated region
  $region10: #{trivial_base_forward.1} parent=0 // pred_check
    _
  $region11: #{trivial_base_forward.1} parent=0 // pred_check_branch
    %15 = sbr.rel (0) target = $region13
  $region12: #{trivial_base_forward.1} parent=0 // pred_region
    _
  $region13: #{trivial_base_forward.1} parent=0 // pred_fallthru
    _
  // Predicated region
  $region14: #{trivial_base_forward.1} parent=0 // pred_check
    _
  $region15: #{trivial_base_forward.1} parent=0 // pred_check_branch
    %17 = sbr.rel (0) target = $region17
  $region16: #{trivial_base_forward.1} parent=0 // pred_region
    _
  $region17: #{trivial_base_forward.1} parent=0 // pred_fallthru
    _
  // Predicated region
  $region18: #{trivial_base_forward.1} parent=0 // pred_check
    _
  $region19: #{trivial_base_forward.1} parent=0 // pred_check_branch
    %19 = sbr.rel (0) target = $region21
  $region20: #{trivial_base_forward.1} parent=0 // pred_region
    _
  $region21: #{trivial_base_forward.1} parent=0 // pred_fallthru
    _
  %p20 = scmp.eq.s32.totalorder 0, 0
  // Predicated region
  $region22: #{trivial_base_forward.1} parent=0 // pred_check
    %p21 = pneg %p20
  $region23: #{trivial_base_forward.1} parent=0 // pred_check_branch
    %23 = sbr.rel (%p21) target = $region25
  $region24: #{trivial_base_forward.1} parent=0 // pred_region
    %24 = vst [vmem:[#allocation2] sm:$0xff] 0.0
  $region25: #{trivial_base_forward.1} parent=0 // pred_fallthru
    _
  %v25 = vld [vmem:[%s1] sm:$0xff]
  %v26 = vld [vmem:[%s1 + $0x8] sm:$0xff]
  %v27 = vld [vmem:[%s1 + $0x10] sm:$0xff]
  %v28 = vld [vmem:[%s1 + $0x18] sm:$0xff]
  %v29 = vld [vmem:[%s1 + $0x20] sm:$0xff]
  %v30 = vld [vmem:[%s1 + $0x28] sm:$0xff]
  %v31 = vld [vmem:[%s1 + $0x30] sm:$0xff]
  %v32 = vld [vmem:[%s1 + $0x38] sm:$0xff]
  %v33 = vld [vmem:[%s1 + $0x40] sm:$0xff]
  %v34 = vld [vmem:[%s1 + $0x48] sm:$0xff]
  %v35 = vld [vmem:[%s1 + $0x50] sm:$0xff]
  %v36 = vld [vmem:[%s1 + $0x58] sm:$0xff]
  %v37 = vld [vmem:[%s1 + $0x60] sm:$0xff]
  %v38 = vld [vmem:[%s1 + $0x68] sm:$0xff]
  %v39 = vld [vmem:[%s1 + $0x70] sm:$0xff]
  %v40 = vld [vmem:[%s1 + $0x78] sm:$0xff]
  %v41 = vld [vmem:[%s2] sm:$0xff]
  %v42 = vld [vmem:[%s2 + $0x8] sm:$0xff]
  %v43 = vld [vmem:[%s2 + $0x10] sm:$0xff]
  %v44 = vld [vmem:[%s2 + $0x18] sm:$0xff]
  %vm45 = vcmask 261120
  %v47 = vsel %vm45, %v25, 0
  %v50 = vsel %vm45, %v26, 0
  %v53 = vsel %vm45, %v27, 0
  %v56 = vsel %vm45, %v28, 0
  %v59 = vsel %vm45, %v29, 0
  %v62 = vsel %vm45, %v30, 0
  %v65 = vsel %vm45, %v31, 0
  %v68 = vsel %vm45, %v32, 0
  %v71 = vsel %vm45, %v33, 0
  %v74 = vsel %vm45, %v34, 0
  %v77 = vsel %vm45, %v35, 0
  %v80 = vsel %vm45, %v36, 0
  %v83 = vsel %vm45, %v37, 0
  %v86 = vsel %vm45, %v38, 0
  %v89 = vsel %vm45, %v39, 0
  %v92 = vsel %vm45, %v40, 0
  %94 = vmatprep.subr.mxu0 0.0
  %95 = vmatpush1.msra.mxu0 %v41
  %96 = vmatprep.subr.mxu0 0.0
  %97 = vmatpush1.msra.mxu0 %v42
  %98 = vmatprep.subr.mxu0 0.0
  %99 = vmatpush1.msra.mxu0 %v43
  %100 = vmatprep.subr.mxu0 0.0
  %101 = vmatpush1.msra.mxu0 %v44
  %102 = vmatprep.subr.mxu0 0.0
  %103 = vmatpush1.msra.mxu0 0.0
  %104 = vmatprep.subr.mxu0 0.0
  %105 = vmatpush1.msra.mxu0 0.0
  %106 = vmatprep.subr.mxu0 0.0
  %107 = vmatpush1.msra.mxu0 0.0
  %108 = vmatprep.subr.mxu0 0.0
  %109 = vmatpush1.msra.mxu0 0.0
  %110 = vmatprep.subr.mxu0 0.0
  %111 = vmatpush1.msra.mxu0 0.0
  %112 = vmatprep.subr.mxu0 0.0
  %113 = vmatpush1.msra.mxu0 0.0
  %114 = vmatprep.subr.mxu0 0.0
  %115 = vmatpush1.msra.mxu0 0.0
  %116 = vmatprep.subr.mxu0 0.0
  %117 = vmatpush1.msra.mxu0 0.0
  %118 = vmatprep.subr.mxu0 0.0
  %119 = vmatpush1.msra.mxu0 0.0
  %120 = vmatprep.subr.mxu0 0.0
  %121 = vmatpush1.msra.mxu0 0.0
  %122 = vmatprep.subr.mxu0 0.0
  %123 = vmatpush1.msra.mxu0 0.0
  %124 = vmatprep.subr.mxu0 0.0
  %125 = vmatpush1.msra.mxu0 0.0
  %126 = vmatprep.subr.mxu0 0.0
  %127 = vmatpush1.msra.mxu0 0.0
  %128 = vmatprep.subr.mxu0 0.0
  %129 = vmatpush1.msra.mxu0 0.0
  %130 = vmatprep.subr.mxu0 0.0
  %131 = vmatpush1.msra.mxu0 0.0
  %132 = vmatprep.subr.mxu0 0.0
  %133 = vmatpush1.msra.mxu0 0.0
  %134 = vmatprep.subr.mxu0 0.0
  %135 = vmatpush1.msra.mxu0 0.0
  %136 = vmatprep.subr.mxu0 0.0
  %137 = vmatpush1.msra.mxu0 0.0
  %138 = vmatprep.subr.mxu0 0.0
  %139 = vmatpush1.msra.mxu0 0.0
  %140 = vmatprep.subr.mxu0 0.0
  %141 = vmatpush1.msra.mxu0 0.0
  %142 = vmatprep.subr.mxu0 0.0
  %143 = vmatpush1.msra.mxu0 0.0
  %144 = vmatprep.subr.mxu0 0.0
  %145 = vmatpush1.msra.mxu0 0.0
  %146 = vmatprep.subr.mxu0 0.0
  %147 = vmatpush1.msra.mxu0 0.0
  %148 = vmatprep.subr.mxu0 0.0
  %149 = vmatpush1.msra.mxu0 0.0
  %150 = vmatprep.subr.mxu0 0.0
  %151 = vmatpush1.msra.mxu0 0.0
  %152 = vmatprep.subr.mxu0 0.0
  %153 = vmatpush1.msra.mxu0 0.0
  %154 = vmatprep.subr.mxu0 0.0
  %155 = vmatpush1.msra.mxu0 0.0
  %156 = vmatprep.subr.mxu0 0.0
  %157 = vmatpush1.msra.mxu0 0.0
  %158 = vmatprep.mubr.f32.mxu0 0.0
  %159 = vmatmul.mubr.f32.gmra.mrb[0].mxu0 %v47
  %v160 = vpop.f32.mrb[0].mxu0
  %v161 = vadd.f32 0.0, %v160
  %v162 = vpop.f32.mrb[0].mxu0
  %163 = vmatprep.mubr.f32.mxu0 0.0
  %164 = vmatmul.mubr.f32.gmra.mrb[0].mxu0 %v50
  %v165 = vpop.f32.mrb[0].mxu0
  %v166 = vadd.f32 0.0, %v165
  %v167 = vpop.f32.mrb[0].mxu0
  %168 = vmatprep.mubr.f32.mxu0 0.0
  %169 = vmatmul.mubr.f32.gmra.mrb[0].mxu0 %v53
  %v170 = vpop.f32.mrb[0].mxu0
  %v171 = vadd.f32 0.0, %v170
  %v172 = vpop.f32.mrb[0].mxu0
  %173 = vmatprep.mubr.f32.mxu0 0.0
  %174 = vmatmul.mubr.f32.gmra.mrb[0].mxu0 %v56
  %v175 = vpop.f32.mrb[0].mxu0
  %v176 = vadd.f32 0.0, %v175
  %v177 = vpop.f32.mrb[0].mxu0
  %178 = vmatprep.mubr.f32.mxu0 0.0
  %179 = vmatmul.mubr.f32.gmra.mrb[0].mxu0 %v59
  %v180 = vpop.f32.mrb[0].mxu0
  %v181 = vadd.f32 0.0, %v180
  %v182 = vpop.f32.mrb[0].mxu0
  %183 = vmatprep.mubr.f32.mxu0 0.0
  %184 = vmatmul.mubr.f32.gmra.mrb[0].mxu0 %v62
  %v185 = vpop.f32.mrb[0].mxu0
  %v186 = vadd.f32 0.0, %v185
  %v187 = vpop.f32.mrb[0].mxu0
  %188 = vmatprep.mubr.f32.mxu0 0.0
  %189 = vmatmul.mubr.f32.gmra.mrb[0].mxu0 %v65
  %v190 = vpop.f32.mrb[0].mxu0
  %v191 = vadd.f32 0.0, %v190
  %v192 = vpop.f32.mrb[0].mxu0
  %193 = vmatprep.mubr.f32.mxu0 0.0
  %194 = vmatmul.mubr.f32.gmra.mrb[0].mxu0 %v68
  %v195 = vpop.f32.mrb[0].mxu0
  %v196 = vadd.f32 0.0, %v195
  %v197 = vpop.f32.mrb[0].mxu0
  %198 = vmatprep.mubr.f32.mxu0 0.0
  %199 = vmatmul.mubr.f32.gmra.mrb[0].mxu0 %v71
  %v200 = vpop.f32.mrb[0].mxu0
  %v201 = vadd.f32 0.0, %v200
  %v202 = vpop.f32.mrb[0].mxu0
  %203 = vmatprep.mubr.f32.mxu0 0.0
  %204 = vmatmul.mubr.f32.gmra.mrb[0].mxu0 %v74
  %v205 = vpop.f32.mrb[0].mxu0
  %v206 = vadd.f32 0.0, %v205
  %v207 = vpop.f32.mrb[0].mxu0
  %208 = vmatprep.mubr.f32.mxu0 0.0
  %209 = vmatmul.mubr.f32.gmra.mrb[0].mxu0 %v77
  %v210 = vpop.f32.mrb[0].mxu0
  %v211 = vadd.f32 0.0, %v210
  %v212 = vpop.f32.mrb[0].mxu0
  %213 = vmatprep.mubr.f32.mxu0 0.0
  %214 = vmatmul.mubr.f32.gmra.mrb[0].mxu0 %v80
  %v215 = vpop.f32.mrb[0].mxu0
  %v216 = vadd.f32 0.0, %v215
  %v217 = vpop.f32.mrb[0].mxu0
  %218 = vmatprep.mubr.f32.mxu0 0.0
  %219 = vmatmul.mubr.f32.gmra.mrb[0].mxu0 %v83
  %v220 = vpop.f32.mrb[0].mxu0
  %v221 = vadd.f32 0.0, %v220
  %v222 = vpop.f32.mrb[0].mxu0
  %223 = vmatprep.mubr.f32.mxu0 0.0
  %224 = vmatmul.mubr.f32.gmra.mrb[0].mxu0 %v86
  %v225 = vpop.f32.mrb[0].mxu0
  %v226 = vadd.f32 0.0, %v225
  %v227 = vpop.f32.mrb[0].mxu0
  %228 = vmatprep.mubr.f32.mxu0 0.0
  %229 = vmatmul.mubr.f32.gmra.mrb[0].mxu0 %v89
  %v230 = vpop.f32.mrb[0].mxu0
  %v231 = vadd.f32 0.0, %v230
  %v232 = vpop.f32.mrb[0].mxu0
  %233 = vmatprep.mubr.f32.mxu0 0.0
  %234 = vmatmul.mubr.f32.gmra.mrb[0].mxu0 %v92
  %v235 = vpop.f32.mrb[0].mxu0
  %v236 = vadd.f32 0.0, %v235
  %v237 = vpop.f32.mrb[0].mxu0
  %238 = vdwg.mxu0
  %v239 = vld [vmem:[%s0] sm:$0x1]
  %v240 = vlaneseq
  %v241 = vshrl.u32 %v240, 7
  %v242 = vlaneseq
  %v243 = vshrl.u32 %v242, 7
  %v244 = vsub.s32 0, %v243
  %v245 = vrot.slane %v239, %v244
  %vm246 = vcmp.eq.s32.totalorder %v241, %v245
  %v247 = vsel %vm246, 1, 0
  %v248 = vcvt.s32.f32 %v247
  %v249 = vld [vmem:[#allocation2] sm:$0xff]
  %250 = vmatprep.subr.mxu0 0.0
  %251 = vmatpush1.msra.mxu0 %v161
  %252 = vmatprep.subr.mxu0 0.0
  %253 = vmatpush1.msra.mxu0 %v166
  %254 = vmatprep.subr.mxu0 0.0
  %255 = vmatpush1.msra.mxu0 %v171
  %256 = vmatprep.subr.mxu0 0.0
  %257 = vmatpush1.msra.mxu0 %v176
  %258 = vmatprep.subr.mxu0 0.0
  %259 = vmatpush1.msra.mxu0 %v181
  %260 = vmatprep.subr.mxu0 0.0
  %261 = vmatpush1.msra.mxu0 %v186
  %262 = vmatprep.subr.mxu0 0.0
  %263 = vmatpush1.msra.mxu0 %v191
  %264 = vmatprep.subr.mxu0 0.0
  %265 = vmatpush1.msra.mxu0 %v196
  %266 = vmatprep.subr.mxu0 0.0
  %267 = vmatpush1.msra.mxu0 %v201
  %268 = vmatprep.subr.mxu0 0.0
  %269 = vmatpush1.msra.mxu0 %v206
  %270 = vmatprep.subr.mxu0 0.0
  %271 = vmatpush1.msra.mxu0 %v211
  %272 = vmatprep.subr.mxu0 0.0
  %273 = vmatpush1.msra.mxu0 %v216
  %274 = vmatprep.subr.mxu0 0.0
  %275 = vmatpush1.msra.mxu0 %v221
  %276 = vmatprep.subr.mxu0 0.0
  %277 = vmatpush1.msra.mxu0 %v226
  %278 = vmatprep.subr.mxu0 0.0
  %279 = vmatpush1.msra.mxu0 %v231
  %280 = vmatprep.subr.mxu0 0.0
  %281 = vmatpush1.msra.mxu0 %v236
  %282 = vmatprep.subr.mxu0 0.0
  %283 = vmatpush1.msra.mxu0 0.0
  %284 = vmatprep.subr.mxu0 0.0
  %285 = vmatpush1.msra.mxu0 0.0
  %286 = vmatprep.subr.mxu0 0.0
  %287 = vmatpush1.msra.mxu0 0.0
  %288 = vmatprep.subr.mxu0 0.0
  %289 = vmatpush1.msra.mxu0 0.0
  %290 = vmatprep.subr.mxu0 0.0
  %291 = vmatpush1.msra.mxu0 0.0
  %292 = vmatprep.subr.mxu0 0.0
  %293 = vmatpush1.msra.mxu0 0.0
  %294 = vmatprep.subr.mxu0 0.0
  %295 = vmatpush1.msra.mxu0 0.0
  %296 = vmatprep.subr.mxu0 0.0
  %297 = vmatpush1.msra.mxu0 0.0
  %298 = vmatprep.subr.mxu0 0.0
  %299 = vmatpush1.msra.mxu0 0.0
  %300 = vmatprep.subr.mxu0 0.0
  %301 = vmatpush1.msra.mxu0 0.0
  %302 = vmatprep.subr.mxu0 0.0
  %303 = vmatpush1.msra.mxu0 0.0
  %304 = vmatprep.subr.mxu0 0.0
  %305 = vmatpush1.msra.mxu0 0.0
  %306 = vmatprep.subr.mxu0 0.0
  %307 = vmatpush1.msra.mxu0 0.0
  %308 = vmatprep.subr.mxu0 0.0
  %309 = vmatpush1.msra.mxu0 0.0
  %310 = vmatprep.subr.mxu0 0.0
  %311 = vmatpush1.msra.mxu0 0.0
  %312 = vmatprep.subr.mxu0 0.0
  %313 = vmatpush1.msra.mxu0 0.0
  %314 = vmatprep.mubr.f32.mxu0 0.0
  %315 = vmatmul.mubr.f32.gmra.mrb[0].mxu0 %v248
  %v316 = vpop.f32.mrb[0].mxu0
  %v317 = vadd.f32 0.0, %v316
  %v318 = vpop.f32.mrb[0].mxu0
  %319 = vdwg.mxu0
  %v320 = vadd.f32 %v249, %v317
  %321 = vst [vmem:[#allocation2] sm:$0xff] %v320
  // Predicated region
  $region26: #{trivial_base_forward.1} parent=0 // pred_check
    %p322 = pneg %p20
  $region27: #{trivial_base_forward.1} parent=0 // pred_check_branch
    %324 = sbr.rel (%p322) target = $region29
  $region28: #{trivial_base_forward.1} parent=0 // pred_region
    %v325 = vld [vmem:[#allocation2] sm:$0xff]
    %v326 = vld [vmem:[%s3] sm:$0xff]
    %328 = vset.pattern.permute.xlu0 0
    %329 = vperm.xlu0 %328, %v326
    %v330 = vpop.permute.xlu0 %329
    %v332 = vmul.f32 %v325, %v330
    %v333 = vld [vmem:[%s4] sm:$0xff]
    %v334 = vadd.f32 %v332, %v333
    %335 = vst [vmem:[%s5] sm:$0xff] %v334
  $region29: #{trivial_base_forward.1} parent=0 // pred_fallthru
    _
  // Predicated region
  $region30: #{trivial_base_forward.1} parent=0 // pred_check
    _
  $region31: #{trivial_base_forward.1} parent=0 // pred_check_branch
    %337 = sbr.rel (0) target = $region33
  $region32: #{trivial_base_forward.1} parent=0 // pred_region
    _
  $region33: #{trivial_base_forward.1} parent=0 // pred_fallthru
    _
  // Predicated region
  $region34: #{trivial_base_forward.1} parent=0 // pred_check
    _
  $region35: #{trivial_base_forward.1} parent=0 // pred_check_branch
    %339 = sbr.rel (0) target = $region37
  $region36: #{trivial_base_forward.1} parent=0 // pred_region
    _
  $region37: #{trivial_base_forward.1} parent=0 // pred_fallthru
    _

</llo_original>
